<compile_context>
chip_gen: v5e
topology: v5e:2x2
jax: 0.10.0
libtpu: 0.0.40
codegen_flags: <defaults>
</compile_context>

<pallas_src>
import functools

import numpy as np
import jax
import jax.numpy as jnp
from jax.experimental import pallas as pl
from jax.experimental.pallas import tpu as pltpu


# ----------------------------- host-side glue ------------------------------ #
def scaled_laplacian(W: np.ndarray) -> np.ndarray:
    """~L = 2L/lambda_max - I."""
    # TODO(synk): torch uses scipy.sparse.linalg.eigs(L, k=1, which='LR'); dense numpy
    # eigvals gives the same lambda_max for these tiny symmetric graphs.
    N = W.shape[0]
    D = np.diag(W.sum(axis=1))
    L = D - W
    lambda_max = float(np.max(np.real(np.linalg.eigvals(L))))
    return (2.0 * L) / lambda_max - np.identity(N)


def cheb_polynomial(L_tilde: np.ndarray, K: int) -> np.ndarray:
    """Chebyshev polynomials T_0..T_{K-1} (elementwise recursion, as in ASTGCN)."""
    N = L_tilde.shape[0]
    polys = [np.identity(N), L_tilde.copy()]
    for _ in range(2, K):
        polys.append(2.0 * L_tilde * polys[-1] - polys[-2])
    return np.stack(polys[:K], axis=0).astype(np.float32)


@functools.lru_cache(maxsize=32)
def _pattern_for_adj(adj_bytes: bytes, n_adj: int, K: int, S: int):
    """(K, S, S) Chebyshev multiplier pattern.

    pattern[k, i, j] is the (i, j) factor produced by torch's
    (T_k * att.reshape(-1,5,5)).reshape(-1,10,10) flat-order reshape chain
    (identical for every batch element). Depends only on (adj, K, S) -> cached.
    """
    W = np.frombuffer(adj_bytes, dtype=np.float64).reshape(n_adj, n_adj)
    L_tilde = scaled_laplacian(W)
    cheb = cheb_polynomial(L_tilde, K)                                    # (K, n, n)
    rep = (S * S) // (n_adj * n_adj)
    pattern = np.broadcast_to(
        cheb[:, None, :, :], (K, rep, n_adj, n_adj)).reshape(K, S, S)     # (K, S, S)
    return jnp.asarray(pattern, jnp.float32)


# ------------------------------- Pallas kernel ----------------------------- #
def cheb_conv_sat_kernel(m_ref, x_ref, o_ref):
    # m_ref: (B, Fo, S)   m[b, f, j] = sum_{k,i} Theta[k,i,f]*pattern[k,i,j]*att[b,i,j]
    # x_ref: (B, S, TL)   x[b, j, t]  (T on the lane axis, TL a multiple of 128)
    # o_ref: (Fo, S, TL)  out[f, j, t]
    B = x_ref.shape[0]
    # b-contraction via whole leading-index views; seed with the b = 0 term.
    acc = m_ref[0][:, :, None] * x_ref[0][None, :, :]
    for b in range(1, B):
        acc = acc + m_ref[b][:, :, None] * x_ref[b][None, :, :]
    o_ref[...] = jnp.maximum(acc, 0.0)                                    # F.relu


# --------------------------- jitted device wrapper -------------------------- #
@functools.partial(jax.jit, static_argnames=("t_block",))
def _cheb_conv_sat_device(x, spatial_attention, theta, pattern, *, t_block):
    T, B, S = x.shape
    K, _, Fo = theta.shape
    f32 = jnp.float32
    hp = jax.lax.Precision.HIGHEST

    x = x.astype(f32)
    att = spatial_attention.astype(f32)
    theta = theta.astype(f32)

    # Grid-invariant contraction hoisted out of the kernel (tiny: B*Fo*S floats, one-shot).
    # m[b, f, j] = sum_{k,i} Theta[k, i, f] * pattern[k, i, j] * att[b, i, j]
    m = jnp.einsum("kif,kij,bij->bfj", theta, pattern, att, precision=hp)  # (B, Fo, S)

    # Layout plumbing (XLA, outside the kernel): T becomes the lane axis, padded to a
    # multiple of t_block (itself a multiple of 128) so kernel stores are full-width.
    T_pad = ((T + t_block - 1) // t_block) * t_block
    x_t = jnp.transpose(x, (1, 2, 0))                                      # (B, S, T)
    if T_pad != T:
        x_t = jnp.pad(x_t, ((0, 0), (0, 0), (0, T_pad - T)))

    grid = (T_pad // t_block,)
    cost = pl.CostEstimate(
        flops=2 * B * Fo * S * T_pad,
        transcendentals=0,
        bytes_accessed=4 * (B * S * T_pad + Fo * S * T_pad + B * Fo * S),
    )
    out_t = pl.pallas_call(
        cheb_conv_sat_kernel,
        out_shape=jax.ShapeDtypeStruct((Fo, S, T_pad), f32),
        grid=grid,
        in_specs=[
            pl.BlockSpec((B, Fo, S), lambda t: (0, 0, 0)),                 # m (resident)
            pl.BlockSpec((B, S, t_block), lambda t: (0, 0, t)),            # x (streamed)
        ],
        out_specs=pl.BlockSpec((Fo, S, t_block), lambda t: (0, 0, t)),
        compiler_params=pltpu.CompilerParams(dimension_semantics=("parallel",)),
        cost_estimate=cost,
    )(m, x_t)

    # (Fo, S, T_pad) -> (T, Fo, S, 1)
    return jnp.transpose(out_t[:, :, :T], (2, 0, 1))[..., None]


# --------------------------------- wrapper --------------------------------- #
def cheb_conv_with_sat(x, adj_mx, spatial_attention, theta):
    """x: (T,B,S), adj_mx: (5,5), spatial_attention: (B,S,S), theta: (K,S,Fo)."""
    T, B, S = x.shape
    K, S_t, Fo = theta.shape
    n_adj = adj_mx.shape[0]
    assert S_t == S, "num_of_timesteps must equal num_sensor (required by the torch matmul)"
    assert (S * S) % (n_adj * n_adj) == 0, "sensor grid must be compatible with the adj reshape"
    # inherited from torch's  zeros(T, B, S) + (T, Fo, S)  broadcast:
    assert Fo == B, "num_of_filters must equal batch_size (implicit torch broadcast)"

    # Host glue cached per adjacency (eigendecomposition + Chebyshev run once per graph).
    adj_bytes = np.asarray(adj_mx, dtype=np.float64).tobytes()
    pattern = _pattern_for_adj(adj_bytes, n_adj, K, S)

    # T-block selection (lane-axis chunks are multiples of 128):
    #   - tiny T:           one 128-lane step
    #   - moderate T (<=4K): two "parallel" steps so v7x's 2nd TensorCore has work
    #   - large T:          2048-lane blocks (in+out double buffers ~2 MB everywhere)
    LANE = 128
    tiles = -(-T // LANE)
    if tiles <= 1:
        t_block = LANE
    elif tiles <= 32:
        t_block = LANE * ((tiles + 1) // 2)
    else:
        t_block = 2048

    return _cheb_conv_sat_device(x, spatial_attention, theta, pattern, t_block=t_block)


# ---------------------------- pure-JAX reference ---------------------------- #
def reference(x, adj_mx, spatial_attention, theta):
    """Mirrors the torch forward op-for-op."""
    K = theta.shape[0]
    T, B, S = x.shape
    L_tilde = scaled_laplacian(np.asarray(adj_mx, dtype=np.float64))
    cheb = jnp.asarray(cheb_polynomial(L_tilde, K))
    out = jnp.zeros((T, B, S), jnp.float32)
    hp = jax.lax.Precision.HIGHEST
    for k in range(K):
        T_k = cheb[k]
        twa = (T_k * spatial_attention.reshape(-1, 5, 5)).reshape(-1, 10, 10)     # (B,10,10)
        rhs = jnp.matmul(jnp.transpose(twa, (2, 1, 0)), jnp.transpose(x, (2, 1, 0)),
                         precision=hp)
        out = out + jnp.transpose(
            jnp.matmul(jnp.transpose(rhs, (0, 2, 1)), theta[k], precision=hp), (1, 2, 0))
    return jax.nn.relu(out)[..., None]


if __name__ == "__main__":
    # shapes implied by the forward pass:
    T, B, S, K = 8, 4, 10, 3          # seq_len, batch, num_sensor, cheb order
    Fo = B                            # num_of_filters must equal batch_size for the add
    n_adj = 5                         # adjacency hard-coded to 5x5 in the torch code

    key = jax.random.PRNGKey(0)
    k_adj, k_theta, k_x, k_att = jax.random.split(key, 4)

    adj = jnp.abs(jax.random.normal(k_adj, (n_adj, n_adj), jnp.float32))
    adj = 0.5 * (adj + adj.T)
    adj = adj.at[jnp.arange(n_adj), jnp.arange(n_adj)].set(0.0)

    theta = jax.random.normal(k_theta, (K, S, Fo), jnp.float32)       # self.Theta
    x = jax.random.normal(k_x, (T, B, S), jnp.float32)
    spatial_attention = jax.random.normal(k_att, (B, S, S), jnp.float32)

    out = jax.block_until_ready(cheb_conv_with_sat(x, adj, spatial_attention, theta))
    # second call hits the cached host glue + jit cache (no eig / retrace / recompile)
    out2 = jax.block_until_ready(cheb_conv_with_sat(x, adj, spatial_attention, theta))

    ref = jax.block_until_ready(reference(x, adj, spatial_attention, theta))
    np.testing.assert_allclose(np.asarray(out), np.asarray(ref), rtol=1e-4, atol=1e-4)
    np.testing.assert_allclose(np.asarray(out2), np.asarray(ref), rtol=1e-4, atol=1e-4)
    assert out.shape == (T, Fo, S, 1)

    print("KERNEL_OK")
</pallas_src>

<mosaic_0001>
module attributes {stable_mosaic.version = 11 : i64} {
  func.func @cheb_conv_sat_kernel(%arg0: i32, %arg1: memref<4x4x10xf32, #tpu.memory_space<vmem>>, %arg2: memref<4x10x128xf32, #tpu.memory_space<vmem>>, %arg3: memref<4x10x128xf32, #tpu.memory_space<vmem>>) attributes {dimension_semantics = [#tpu.dimension_semantics<parallel>], iteration_bounds = array<i64: 1>, scalar_prefetch = 0 : i64, scratch_operands = 0 : i64, tpu.core_type = #tpu.core_type<tc>, window_params = [{pipeline_mode = #tpu.pipeline_mode<synchronous>, transform_indices = @transform_0, window_bounds = array<i64: 4, 4, 10>}, {transform_indices = @transform_1, window_bounds = array<i64: 4, 10, 128>}, {transform_indices = @transform_2, window_bounds = array<i64: 4, 10, 128>}]} {
    %c0 = arith.constant 0 : index
    %c0_0 = arith.constant 0 : index
    %c0_1 = arith.constant 0 : index
    %0 = vector.load %arg1[%c0, %c0_0, %c0_1] : memref<4x4x10xf32, #tpu.memory_space<vmem>>, vector<1x4x10xf32>
    %1 = vector.shape_cast %0 : vector<1x4x10xf32> to vector<4x10xf32>
    %2 = vector.shape_cast %1 : vector<4x10xf32> to vector<4x10x1xf32>
    %c0_2 = arith.constant 0 : index
    %c0_3 = arith.constant 0 : index
    %c0_4 = arith.constant 0 : index
    %3 = vector.load %arg2[%c0_2, %c0_3, %c0_4] : memref<4x10x128xf32, #tpu.memory_space<vmem>>, vector<1x10x128xf32>
    %4 = vector.shape_cast %3 : vector<1x10x128xf32> to vector<10x128xf32>
    %5 = vector.shape_cast %4 : vector<10x128xf32> to vector<1x10x128xf32>
    %6 = vector.broadcast %2 : vector<4x10x1xf32> to vector<4x10x128xf32>
    %7 = vector.broadcast %5 : vector<1x10x128xf32> to vector<4x10x128xf32>
    %8 = arith.mulf %6, %7 : vector<4x10x128xf32>
    %c1 = arith.constant 1 : index
    %c0_5 = arith.constant 0 : index
    %c0_6 = arith.constant 0 : index
    %9 = vector.load %arg1[%c1, %c0_5, %c0_6] : memref<4x4x10xf32, #tpu.memory_space<vmem>>, vector<1x4x10xf32>
    %10 = vector.shape_cast %9 : vector<1x4x10xf32> to vector<4x10xf32>
    %11 = vector.shape_cast %10 : vector<4x10xf32> to vector<4x10x1xf32>
    %c1_7 = arith.constant 1 : index
    %c0_8 = arith.constant 0 : index
    %c0_9 = arith.constant 0 : index
    %12 = vector.load %arg2[%c1_7, %c0_8, %c0_9] : memref<4x10x128xf32, #tpu.memory_space<vmem>>, vector<1x10x128xf32>
    %13 = vector.shape_cast %12 : vector<1x10x128xf32> to vector<10x128xf32>
    %14 = vector.shape_cast %13 : vector<10x128xf32> to vector<1x10x128xf32>
    %15 = vector.broadcast %11 : vector<4x10x1xf32> to vector<4x10x128xf32>
    %16 = vector.broadcast %14 : vector<1x10x128xf32> to vector<4x10x128xf32>
    %17 = arith.mulf %15, %16 : vector<4x10x128xf32>
    %18 = arith.addf %8, %17 : vector<4x10x128xf32>
    %c2 = arith.constant 2 : index
    %c0_10 = arith.constant 0 : index
    %c0_11 = arith.constant 0 : index
    %19 = vector.load %arg1[%c2, %c0_10, %c0_11] : memref<4x4x10xf32, #tpu.memory_space<vmem>>, vector<1x4x10xf32>
    %20 = vector.shape_cast %19 : vector<1x4x10xf32> to vector<4x10xf32>
    %21 = vector.shape_cast %20 : vector<4x10xf32> to vector<4x10x1xf32>
    %c2_12 = arith.constant 2 : index
    %c0_13 = arith.constant 0 : index
    %c0_14 = arith.constant 0 : index
    %22 = vector.load %arg2[%c2_12, %c0_13, %c0_14] : memref<4x10x128xf32, #tpu.memory_space<vmem>>, vector<1x10x128xf32>
    %23 = vector.shape_cast %22 : vector<1x10x128xf32> to vector<10x128xf32>
    %24 = vector.shape_cast %23 : vector<10x128xf32> to vector<1x10x128xf32>
    %25 = vector.broadcast %21 : vector<4x10x1xf32> to vector<4x10x128xf32>
    %26 = vector.broadcast %24 : vector<1x10x128xf32> to vector<4x10x128xf32>
    %27 = arith.mulf %25, %26 : vector<4x10x128xf32>
    %28 = arith.addf %18, %27 : vector<4x10x128xf32>
    %c3 = arith.constant 3 : index
    %c0_15 = arith.constant 0 : index
    %c0_16 = arith.constant 0 : index
    %29 = vector.load %arg1[%c3, %c0_15, %c0_16] : memref<4x4x10xf32, #tpu.memory_space<vmem>>, vector<1x4x10xf32>
    %30 = vector.shape_cast %29 : vector<1x4x10xf32> to vector<4x10xf32>
    %31 = vector.shape_cast %30 : vector<4x10xf32> to vector<4x10x1xf32>
    %c3_17 = arith.constant 3 : index
    %c0_18 = arith.constant 0 : index
    %c0_19 = arith.constant 0 : index
    %32 = vector.load %arg2[%c3_17, %c0_18, %c0_19] : memref<4x10x128xf32, #tpu.memory_space<vmem>>, vector<1x10x128xf32>
    %33 = vector.shape_cast %32 : vector<1x10x128xf32> to vector<10x128xf32>
    %34 = vector.shape_cast %33 : vector<10x128xf32> to vector<1x10x128xf32>
    %35 = vector.broadcast %31 : vector<4x10x1xf32> to vector<4x10x128xf32>
    %36 = vector.broadcast %34 : vector<1x10x128xf32> to vector<4x10x128xf32>
    %37 = arith.mulf %35, %36 : vector<4x10x128xf32>
    %38 = arith.addf %28, %37 : vector<4x10x128xf32>
    %cst = arith.constant 0.000000e+00 : f32
    %39 = vector.broadcast %cst : f32 to vector<4x10x128xf32>
    %40 = arith.maximumf %38, %39 : vector<4x10x128xf32>
    %c0_20 = arith.constant 0 : index
    %c0_21 = arith.constant 0 : index
    %c0_22 = arith.constant 0 : index
    %41 = vector.load %arg3[%c0_20, %c0_21, %c0_22] : memref<4x10x128xf32, #tpu.memory_space<vmem>>, vector<4x10x128xf32>
    tpu.vector_store %arg3[%c0_20, %c0_21, %c0_22], %40 {strides = array<i32>} : memref<4x10x128xf32, #tpu.memory_space<vmem>>, vector<4x10x128xf32>,
    return
  }
  func.func @transform_0(%arg0: i32) -> (i32, i32, i32) {
    %c0_i32 = arith.constant 0 : i32
    %c0_i32_0 = arith.constant 0 : i32
    %c0_i32_1 = arith.constant 0 : i32
    %c0_i32_2 = arith.constant 0 : i32
    return %c0_i32, %c0_i32_0, %c0_i32_1 : i32, i32, i32
  }
  func.func @transform_1(%arg0: i32) -> (i32, i32, i32) {
    %c0_i32 = arith.constant 0 : i32
    %c0_i32_0 = arith.constant 0 : i32
    %c0_i32_1 = arith.constant 0 : i32
    return %c0_i32, %c0_i32_0, %arg0 : i32, i32, i32
  }
  func.func @transform_2(%arg0: i32) -> (i32, i32, i32) {
    %c0_i32 = arith.constant 0 : i32
    %c0_i32_0 = arith.constant 0 : i32
    %c0_i32_1 = arith.constant 0 : i32
    return %c0_i32, %c0_i32_0, %arg0 : i32, i32, i32
  }
}

</mosaic_0001>

<llo_original>
// kernel: _cheb_conv_sat_device.1
$region0: #{_cheb_conv_sat_device.1}
  #allocation0 [shape = 'u32[]', space=smem, size = 0x4, offset = 0x4, fixed_abs, tag = 'smem constant byte address 0x4 - core index']
  #allocation1 [shape = 'u32[72,128]{1,0:T(1,128)}', space=vmem, size = 0x9000, scoped, tag = 'internal scratch']
  %s0 = inlined_call_operand.vmem [shape: f32[4,4,10], index: 0, kind: input, shape index: {}]
  %s1 = inlined_call_operand.vmem [shape: f32[4,10,128], index: 1, kind: input, shape index: {}]
  %s2 = inlined_call_operand.vmem [shape: f32[4,10,128], index: 2, kind: output, shape index: {}]
  %s3 = sld [smem:[#allocation0]]
  $region18: #{_cheb_conv_sat_device.1} parent=0
    _
  %s5 = ssub.s32 1, %s3
  %s6 = scalar_select 0, %s5, %s3
  // Predicated region
  $region2: #{_cheb_conv_sat_device.1} parent=0 // pred_check
    _
  $region3: #{_cheb_conv_sat_device.1} parent=0 // pred_check_branch
    %8 = sbr.rel (0) target = $region5
  $region4: #{_cheb_conv_sat_device.1} parent=0 // pred_region
    _
  $region5: #{_cheb_conv_sat_device.1} parent=0 // pred_fallthru
    _
  // Predicated region
  $region6: #{_cheb_conv_sat_device.1} parent=0 // pred_check
    _
  $region7: #{_cheb_conv_sat_device.1} parent=0 // pred_check_branch
    %10 = sbr.rel (0) target = $region9
  $region8: #{_cheb_conv_sat_device.1} parent=0 // pred_region
    _
  $region9: #{_cheb_conv_sat_device.1} parent=0 // pred_fallthru
    _
  %v11 = vld [vmem:[%s0] sm:$0xf]
  %v12 = vperm.slane %v11, 0
  %v13 = vlaneseq
  %v14 = vshrl.u32 %v13, 7
  %16 = vset.pattern.permute.xlu0 %v14
  %17 = vperm.xlu0 %16, %v12
  %v18 = vpop.permute.xlu0 %17
  %v19 = vlaneseq
  %v20 = vshrl.u32 %v19, 7
  %v21 = vadd.s32 %v20, 8
  %22 = vset.pattern.permute.xlu0 %v21
  %23 = vperm.xlu0 %22, %v12
  %v24 = vpop.permute.xlu0 %23
  %v25 = vperm.slane %v11, 1
  %v26 = vlaneseq
  %v27 = vshrl.u32 %v26, 7
  %29 = vset.pattern.permute.xlu0 %v27
  %30 = vperm.xlu0 %29, %v25
  %v31 = vpop.permute.xlu0 %30
  %v32 = vlaneseq
  %v33 = vshrl.u32 %v32, 7
  %v34 = vadd.s32 %v33, 8
  %35 = vset.pattern.permute.xlu0 %v34
  %36 = vperm.xlu0 %35, %v25
  %v37 = vpop.permute.xlu0 %36
  %v38 = vperm.slane %v11, 2
  %v39 = vlaneseq
  %v40 = vshrl.u32 %v39, 7
  %42 = vset.pattern.permute.xlu0 %v40
  %43 = vperm.xlu0 %42, %v38
  %v44 = vpop.permute.xlu0 %43
  %v45 = vlaneseq
  %v46 = vshrl.u32 %v45, 7
  %v47 = vadd.s32 %v46, 8
  %48 = vset.pattern.permute.xlu0 %v47
  %49 = vperm.xlu0 %48, %v38
  %v50 = vpop.permute.xlu0 %49
  %v51 = vperm.slane %v11, 3
  %v52 = vlaneseq
  %v53 = vshrl.u32 %v52, 7
  %55 = vset.pattern.permute.xlu0 %v53
  %56 = vperm.xlu0 %55, %v51
  %v57 = vpop.permute.xlu0 %56
  %v58 = vlaneseq
  %v59 = vshrl.u32 %v58, 7
  %v60 = vadd.s32 %v59, 8
  %61 = vset.pattern.permute.xlu0 %v60
  %62 = vperm.xlu0 %61, %v51
  %v63 = vpop.permute.xlu0 %62
  %v64 = vld [vmem:[%s1] sm:$0xff]
  %v65 = vld [vmem:[%s1 + $0x8] sm:$0x3]
  %v66 = vmul.f32 %v18, %v64
  %v67 = vmul.f32 %v24, %v65
  %v68 = vmul.f32 %v31, %v64
  %v69 = vmul.f32 %v37, %v65
  %v70 = vmul.f32 %v44, %v64
  %v71 = vmul.f32 %v50, %v65
  %v72 = vmul.f32 %v57, %v64
  %v73 = vmul.f32 %v63, %v65
  %s74 = scalar_lea.vmem %s0, 4
  %v75 = vld [vmem:[%s74] sm:$0xf]
  %v76 = vperm.slane %v75, 0
  %v77 = vlaneseq
  %v78 = vshrl.u32 %v77, 7
  %80 = vset.pattern.permute.xlu0 %v78
  %81 = vperm.xlu0 %80, %v76
  %v82 = vpop.permute.xlu0 %81
  %v83 = vlaneseq
  %v84 = vshrl.u32 %v83, 7
  %v85 = vadd.s32 %v84, 8
  %86 = vset.pattern.permute.xlu0 %v85
  %87 = vperm.xlu0 %86, %v76
  %v88 = vpop.permute.xlu0 %87
  %v89 = vperm.slane %v75, 1
  %v90 = vlaneseq
  %v91 = vshrl.u32 %v90, 7
  %93 = vset.pattern.permute.xlu0 %v91
  %94 = vperm.xlu0 %93, %v89
  %v95 = vpop.permute.xlu0 %94
  %v96 = vlaneseq
  %v97 = vshrl.u32 %v96, 7
  %v98 = vadd.s32 %v97, 8
  %99 = vset.pattern.permute.xlu0 %v98
  %100 = vperm.xlu0 %99, %v89
  %v101 = vpop.permute.xlu0 %100
  %v102 = vperm.slane %v75, 2
  %v103 = vlaneseq
  %v104 = vshrl.u32 %v103, 7
  %106 = vset.pattern.permute.xlu0 %v104
  %107 = vperm.xlu0 %106, %v102
  %v108 = vpop.permute.xlu0 %107
  %v109 = vlaneseq
  %v110 = vshrl.u32 %v109, 7
  %v111 = vadd.s32 %v110, 8
  %112 = vset.pattern.permute.xlu0 %v111
  %113 = vperm.xlu0 %112, %v102
  %v114 = vpop.permute.xlu0 %113
  %v115 = vperm.slane %v75, 3
  %v116 = vlaneseq
  %v117 = vshrl.u32 %v116, 7
  %119 = vset.pattern.permute.xlu0 %v117
  %120 = vperm.xlu0 %119, %v115
  %v121 = vpop.permute.xlu0 %120
  %v122 = vlaneseq
  %v123 = vshrl.u32 %v122, 7
  %v124 = vadd.s32 %v123, 8
  %125 = vset.pattern.permute.xlu0 %v124
  %126 = vperm.xlu0 %125, %v115
  %v127 = vpop.permute.xlu0 %126
  %s128 = scalar_lea.vmem %s1, 16
  %v129 = vld [vmem:[%s128] sm:$0xff]
  %v130 = vld [vmem:[%s128 + $0x8] sm:$0x3]
  %v131 = vmul.f32 %v82, %v129
  %v132 = vmul.f32 %v88, %v130
  %v133 = vmul.f32 %v95, %v129
  %v134 = vmul.f32 %v101, %v130
  %v135 = vmul.f32 %v108, %v129
  %v136 = vmul.f32 %v114, %v130
  %v137 = vmul.f32 %v121, %v129
  %v138 = vmul.f32 %v127, %v130
  %v139 = vadd.f32 %v66, %v131
  %v140 = vadd.f32 %v67, %v132
  %v141 = vadd.f32 %v68, %v133
  %v142 = vadd.f32 %v69, %v134
  %v143 = vadd.f32 %v70, %v135
  %v144 = vadd.f32 %v71, %v136
  %v145 = vadd.f32 %v72, %v137
  %v146 = vadd.f32 %v73, %v138
  %s147 = scalar_lea.vmem %s0, 8
  %v148 = vld [vmem:[%s147] sm:$0xf]
  %v149 = vperm.slane %v148, 0
  %v150 = vlaneseq
  %v151 = vshrl.u32 %v150, 7
  %153 = vset.pattern.permute.xlu0 %v151
  %154 = vperm.xlu0 %153, %v149
  %v155 = vpop.permute.xlu0 %154
  %v156 = vlaneseq
  %v157 = vshrl.u32 %v156, 7
  %v158 = vadd.s32 %v157, 8
  %159 = vset.pattern.permute.xlu0 %v158
  %160 = vperm.xlu0 %159, %v149
  %v161 = vpop.permute.xlu0 %160
  %v162 = vperm.slane %v148, 1
  %v163 = vlaneseq
  %v164 = vshrl.u32 %v163, 7
  %166 = vset.pattern.permute.xlu0 %v164
  %167 = vperm.xlu0 %166, %v162
  %v168 = vpop.permute.xlu0 %167
  %v169 = vlaneseq
  %v170 = vshrl.u32 %v169, 7
  %v171 = vadd.s32 %v170, 8
  %172 = vset.pattern.permute.xlu0 %v171
  %173 = vperm.xlu0 %172, %v162
  %v174 = vpop.permute.xlu0 %173
  %v175 = vperm.slane %v148, 2
  %v176 = vlaneseq
  %v177 = vshrl.u32 %v176, 7
  %179 = vset.pattern.permute.xlu0 %v177
  %180 = vperm.xlu0 %179, %v175
  %v181 = vpop.permute.xlu0 %180
  %v182 = vlaneseq
  %v183 = vshrl.u32 %v182, 7
  %v184 = vadd.s32 %v183, 8
  %185 = vset.pattern.permute.xlu0 %v184
  %186 = vperm.xlu0 %185, %v175
  %v187 = vpop.permute.xlu0 %186
  %v188 = vperm.slane %v148, 3
  %v189 = vlaneseq
  %v190 = vshrl.u32 %v189, 7
  %192 = vset.pattern.permute.xlu0 %v190
  %193 = vperm.xlu0 %192, %v188
  %v194 = vpop.permute.xlu0 %193
  %v195 = vlaneseq
  %v196 = vshrl.u32 %v195, 7
  %v197 = vadd.s32 %v196, 8
  %198 = vset.pattern.permute.xlu0 %v197
  %199 = vperm.xlu0 %198, %v188
  %v200 = vpop.permute.xlu0 %199
  %s201 = scalar_lea.vmem %s1, 32
  %v202 = vld [vmem:[%s201] sm:$0xff]
  %v203 = vld [vmem:[%s201 + $0x8] sm:$0x3]
  %v204 = vmul.f32 %v155, %v202
  %v205 = vmul.f32 %v161, %v203
  %v206 = vmul.f32 %v168, %v202
  %v207 = vmul.f32 %v174, %v203
  %v208 = vmul.f32 %v181, %v202
  %v209 = vmul.f32 %v187, %v203
  %v210 = vmul.f32 %v194, %v202
  %v211 = vmul.f32 %v200, %v203
  %v212 = vadd.f32 %v139, %v204
  %v213 = vadd.f32 %v140, %v205
  %v214 = vadd.f32 %v141, %v206
  %v215 = vadd.f32 %v142, %v207
  %v216 = vadd.f32 %v143, %v208
  %v217 = vadd.f32 %v144, %v209
  %v218 = vadd.f32 %v145, %v210
  %v219 = vadd.f32 %v146, %v211
  %s220 = scalar_lea.vmem %s0, 12
  %v221 = vld [vmem:[%s220] sm:$0xf]
  %v222 = vperm.slane %v221, 0
  %v223 = vlaneseq
  %v224 = vshrl.u32 %v223, 7
  %226 = vset.pattern.permute.xlu0 %v224
  %227 = vperm.xlu0 %226, %v222
  %v228 = vpop.permute.xlu0 %227
  %v229 = vlaneseq
  %v230 = vshrl.u32 %v229, 7
  %v231 = vadd.s32 %v230, 8
  %232 = vset.pattern.permute.xlu0 %v231
  %233 = vperm.xlu0 %232, %v222
  %v234 = vpop.permute.xlu0 %233
  %v235 = vperm.slane %v221, 1
  %v236 = vlaneseq
  %v237 = vshrl.u32 %v236, 7
  %239 = vset.pattern.permute.xlu0 %v237
  %240 = vperm.xlu0 %239, %v235
  %v241 = vpop.permute.xlu0 %240
  %v242 = vlaneseq
  %v243 = vshrl.u32 %v242, 7
  %v244 = vadd.s32 %v243, 8
  %245 = vset.pattern.permute.xlu0 %v244
  %246 = vperm.xlu0 %245, %v235
  %v247 = vpop.permute.xlu0 %246
  %v248 = vperm.slane %v221, 2
  %v249 = vlaneseq
  %v250 = vshrl.u32 %v249, 7
  %252 = vset.pattern.permute.xlu0 %v250
  %253 = vperm.xlu0 %252, %v248
  %v254 = vpop.permute.xlu0 %253
  %v255 = vlaneseq
  %v256 = vshrl.u32 %v255, 7
  %v257 = vadd.s32 %v256, 8
  %258 = vset.pattern.permute.xlu0 %v257
  %259 = vperm.xlu0 %258, %v248
  %v260 = vpop.permute.xlu0 %259
  %v261 = vperm.slane %v221, 3
  %v262 = vlaneseq
  %v263 = vshrl.u32 %v262, 7
  %265 = vset.pattern.permute.xlu0 %v263
  %266 = vperm.xlu0 %265, %v261
  %v267 = vpop.permute.xlu0 %266
  %v268 = vlaneseq
  %v269 = vshrl.u32 %v268, 7
  %v270 = vadd.s32 %v269, 8
  %271 = vset.pattern.permute.xlu0 %v270
  %272 = vperm.xlu0 %271, %v261
  %v273 = vpop.permute.xlu0 %272
  %s274 = scalar_lea.vmem %s1, 48
  %v275 = vld [vmem:[%s274] sm:$0xff]
  %v276 = vld [vmem:[%s274 + $0x8] sm:$0x3]
  %v277 = vmul.f32 %v228, %v275
  %v278 = vmul.f32 %v234, %v276
  %v279 = vmul.f32 %v241, %v275
  %v280 = vmul.f32 %v247, %v276
  %v281 = vmul.f32 %v254, %v275
  %v282 = vmul.f32 %v260, %v276
  %v283 = vmul.f32 %v267, %v275
  %v284 = vmul.f32 %v273, %v276
  %v285 = vadd.f32 %v212, %v277
  %v286 = vadd.f32 %v213, %v278
  %v287 = vadd.f32 %v214, %v279
  %v288 = vadd.f32 %v215, %v280
  %v289 = vadd.f32 %v216, %v281
  %v290 = vadd.f32 %v217, %v282
  %v291 = vadd.f32 %v218, %v283
  %v292 = vadd.f32 %v219, %v284
  %v293 = vmax.f32 %v285, 0.0
  %v294 = vmax.f32 %v286, 0.0
  %v295 = vmax.f32 %v287, 0.0
  %v296 = vmax.f32 %v288, 0.0
  %v297 = vmax.f32 %v289, 0.0
  %v298 = vmax.f32 %v290, 0.0
  %v299 = vmax.f32 %v291, 0.0
  %v300 = vmax.f32 %v292, 0.0
  %301 = vst [vmem:[%s2] sm:$0xff] %v293
  %302 = vst [vmem:[%s2 + $0x8] sm:$0x3] %v294
  %303 = vst [vmem:[%s2 + $0x10] sm:$0xff] %v295
  %304 = vst [vmem:[%s2 + $0x18] sm:$0x3] %v296
  %305 = vst [vmem:[%s2 + $0x20] sm:$0xff] %v297
  %306 = vst [vmem:[%s2 + $0x28] sm:$0x3] %v298
  %307 = vst [vmem:[%s2 + $0x30] sm:$0xff] %v299
  %308 = vst [vmem:[%s2 + $0x38] sm:$0x3] %v300
  // Predicated region
  $region10: #{_cheb_conv_sat_device.1} parent=0 // pred_check
    _
  $region11: #{_cheb_conv_sat_device.1} parent=0 // pred_check_branch
    %310 = sbr.rel (0) target = $region13
  $region12: #{_cheb_conv_sat_device.1} parent=0 // pred_region
    _
  $region13: #{_cheb_conv_sat_device.1} parent=0 // pred_fallthru
    _
  // Predicated region
  $region14: #{_cheb_conv_sat_device.1} parent=0 // pred_check
    _
  $region15: #{_cheb_conv_sat_device.1} parent=0 // pred_check_branch
    %312 = sbr.rel (0) target = $region17
  $region16: #{_cheb_conv_sat_device.1} parent=0 // pred_region
    _
  $region17: #{_cheb_conv_sat_device.1} parent=0 // pred_fallthru
    _

</llo_original>
